<compile_context>
chip_gen: v5e
topology: v5e:2x2
jax: 0.10.0
libtpu: 0.0.40
codegen_flags: <defaults>
</compile_context>

<pallas_src>
import jax
import jax.numpy as jnp
from jax.experimental import pallas as pl
from jax.experimental.pallas import tpu as pltpu


def _round_up(x: int, m: int) -> int:
    return (x + m - 1) // m * m


def _pick_tn(out_cols: int, target: int = 512):
    """Pick a 128-multiple column tile TN (<= target) that divides the padded width."""
    n_pad = _round_up(max(out_cols, 128), 128)
    tn = 128
    cand = 128
    while cand <= min(target, n_pad):
        if n_pad % cand == 0:
            tn = cand
        cand += 128
    return tn, n_pad


def _mlp_kernel_bias(x_ref, w1_ref, b1_ref, w2_ref, b2_ref, o_ref):
    """out[:, j*TN:(j+1)*TN] = silu(x @ W1 + b1) @ W2[:, tile] + b2[:, tile]."""
    h = jnp.dot(x_ref[...].astype(jnp.bfloat16), w1_ref[...],
                preferred_element_type=jnp.float32)
    h = h + b1_ref[...]
    h = h * jax.nn.sigmoid(h)                     # SiLU (sigmoid -> EUP slot)
    out = jnp.dot(h.astype(jnp.bfloat16), w2_ref[...],
                  preferred_element_type=jnp.float32) + b2_ref[...]
    o_ref[...] = out.astype(o_ref.dtype)


def _mlp_kernel_nobias(x_ref, w1_ref, w2_ref, o_ref):
    """adaln_lora variant: both linears are bias-free, so no bias refs / adds at all."""
    h = jnp.dot(x_ref[...].astype(jnp.bfloat16), w1_ref[...],
                preferred_element_type=jnp.float32)
    h = h * jax.nn.sigmoid(h)
    out = jnp.dot(h.astype(jnp.bfloat16), w2_ref[...],
                  preferred_element_type=jnp.float32)
    o_ref[...] = out.astype(o_ref.dtype)


def timestep_embedding_forward(sample, params, use_adaln_lora: bool, *, tn_target: int = 512):
    """Fused Pallas TimestepEmbedding forward; mirrors the PyTorch return convention."""
    w1 = params["w1_t"]                      # [in, out_f]   bf16
    w2 = params["w2_t"]                      # [out_f, out2] bf16
    B, in_f = sample.shape
    out_f = w1.shape[1]
    out2 = w2.shape[1]

    tn, n_pad = _pick_tn(out2, tn_target)    # TN multiple of 128, divides padded width
    if n_pad != out2:                        # keep output stores lane-dense
        w2 = jnp.pad(w2, ((0, 0), (0, n_pad - out2)))
    grid = (n_pad // tn,)

    # Rough VMEM budget: residents (x, W1, b1) + double-buffered streamed tiles
    # (W2 / b2 / out), with headroom.  Capped at 32 MiB so it is safe on v7x too.
    resident = B * in_f * 4 + in_f * out_f * 2 + out_f * 4
    streamed = 2 * (out_f * tn * 2 + tn * 4 + B * tn * 4)
    vmem_limit = int(min(32 * 1024 * 1024,
                         max(16 * 1024 * 1024, 1.5 * (resident + streamed))))

    compiler_params = pltpu.CompilerParams(
        # Each column tile is fully independent (h is recomputed per tile from the
        # VMEM-resident W1), so the axis is "parallel" -> megacore sharding on v7x.
        dimension_semantics=("parallel",),
        vmem_limit_bytes=vmem_limit,
    )

    x_spec = pl.BlockSpec((B, in_f), lambda j: (0, 0))        # resident
    w1_spec = pl.BlockSpec((in_f, out_f), lambda j: (0, 0))   # resident
    w2_spec = pl.BlockSpec((out_f, tn), lambda j: (0, j))     # streamed column tiles
    out_spec = pl.BlockSpec((B, tn), lambda j: (0, j))

    if use_adaln_lora:
        emb = pl.pallas_call(
            _mlp_kernel_nobias,
            out_shape=jax.ShapeDtypeStruct((B, n_pad), sample.dtype),
            grid=grid,
            in_specs=[x_spec, w1_spec, w2_spec],
            out_specs=out_spec,
            compiler_params=compiler_params,
        )(sample, w1, w2)
    else:
        b1 = params["b1"]                    # [1, out_f] f32
        b2 = params["b2"]                    # [1, out2]  f32
        if n_pad != out2:
            b2 = jnp.pad(b2, ((0, 0), (0, n_pad - out2)))
        b1_spec = pl.BlockSpec((1, out_f), lambda j: (0, 0))
        b2_spec = pl.BlockSpec((1, tn), lambda j: (0, j))
        emb = pl.pallas_call(
            _mlp_kernel_bias,
            out_shape=jax.ShapeDtypeStruct((B, n_pad), sample.dtype),
            grid=grid,
            in_specs=[x_spec, w1_spec, b1_spec, w2_spec, b2_spec],
            out_specs=out_spec,
            compiler_params=compiler_params,
        )(sample, w1, b1, w2, b2)

    if n_pad != out2:
        emb = emb[:, :out2]

    if use_adaln_lora:
        # (emb_B_D, adaln_lora_B_3D) = (sample, linear_2(silu(linear_1(sample))))
        return sample, emb
    return emb, None


def init_params(key, in_features: int, out_features: int, use_adaln_lora: bool):
    """PyTorch-style Linear init; weights stored pre-transposed [in, out] in bf16."""
    k1, k2, k3, k4 = jax.random.split(key, 4)
    bound1 = 1.0 / jnp.sqrt(in_features)
    bound2 = 1.0 / jnp.sqrt(out_features)
    out2 = 3 * out_features if use_adaln_lora else out_features

    w1_t = jax.random.uniform(k1, (in_features, out_features), jnp.float32, -bound1, bound1)
    w2_t = jax.random.uniform(k2, (out_features, out2), jnp.float32, -bound2, bound2)
    params = {"w1_t": w1_t.astype(jnp.bfloat16), "w2_t": w2_t.astype(jnp.bfloat16)}
    if not use_adaln_lora:
        params["b1"] = jax.random.uniform(k3, (1, out_features), jnp.float32, -bound1, bound1)
        params["b2"] = jax.random.uniform(k4, (1, out2), jnp.float32, -bound2, bound2)
    return params


def reference_forward(sample, params, use_adaln_lora: bool):
    """Pure-JAX f32 reference (same bf16-stored weight values, f32 math)."""
    w1 = params["w1_t"].astype(jnp.float32)
    w2 = params["w2_t"].astype(jnp.float32)
    h = sample @ w1
    if not use_adaln_lora:
        h = h + params["b1"]
    h = h * jax.nn.sigmoid(h)
    emb = h @ w2
    if not use_adaln_lora:
        emb = emb + params["b2"]
    if use_adaln_lora:
        return sample, emb
    return emb, None


if __name__ == "__main__":
    key = jax.random.PRNGKey(0)
    kx, kp1, kp2 = jax.random.split(key, 3)

    # Small but lane-aligned shapes (feature dims multiples of 128 for lane-dense stores).
    B, in_features, out_features = 8, 128, 256
    sample = jax.random.normal(kx, (B, in_features), jnp.float32)

    ok = True
    for use_adaln_lora, kp in ((False, kp1), (True, kp2)):
        params = init_params(kp, in_features, out_features, use_adaln_lora)

        emb_out, lora_out = timestep_embedding_forward(sample, params, use_adaln_lora)
        emb_out = jax.block_until_ready(emb_out)
        if lora_out is not None:
            lora_out = jax.block_until_ready(lora_out)

        emb_ref, lora_ref = reference_forward(sample, params, use_adaln_lora)

        # Kernel uses bf16 matmul operands with f32 accumulation vs the f32 reference,
        # so tolerances are relaxed accordingly.
        tol = dict(atol=2e-2, rtol=2e-2)
        ok &= bool(jnp.allclose(emb_out, emb_ref, **tol))
        if use_adaln_lora:
            ok &= bool(jnp.allclose(lora_out, lora_ref, **tol))
        else:
            ok &= lora_out is None

    print("KERNEL_OK" if ok else "KERNEL_MISMATCH")
</pallas_src>

<mosaic_0001>
module attributes {stable_mosaic.version = 11 : i64} {
  func.func @_mlp_kernel_bias(%arg0: i32, %arg1: memref<8x128xf32, #tpu.memory_space<vmem>>, %arg2: memref<128x256xbf16, #tpu.memory_space<vmem>>, %arg3: memref<1x256xf32, #tpu.memory_space<vmem>>, %arg4: memref<256x256xbf16, #tpu.memory_space<vmem>>, %arg5: memref<1x256xf32, #tpu.memory_space<vmem>>, %arg6: memref<8x256xf32, #tpu.memory_space<vmem>>) attributes {dimension_semantics = [#tpu.dimension_semantics<parallel>], iteration_bounds = array<i64: 1>, scalar_prefetch = 0 : i64, scratch_operands = 0 : i64, tpu.core_type = #tpu.core_type<tc>, window_params = [{pipeline_mode = #tpu.pipeline_mode<synchronous>, transform_indices = @transform_0, window_bounds = array<i64: 8, 128>}, {pipeline_mode = #tpu.pipeline_mode<synchronous>, transform_indices = @transform_1, window_bounds = array<i64: 128, 256>}, {pipeline_mode = #tpu.pipeline_mode<synchronous>, transform_indices = @transform_2, window_bounds = array<i64: 1, 256>}, {transform_indices = @transform_3, window_bounds = array<i64: 256, 256>}, {transform_indices = @transform_4, window_bounds = array<i64: 1, 256>}, {transform_indices = @transform_5, window_bounds = array<i64: 8, 256>}]} {
    %c0 = arith.constant 0 : index
    %c0_0 = arith.constant 0 : index
    %0 = vector.load %arg1[%c0, %c0_0] : memref<8x128xf32, #tpu.memory_space<vmem>>, vector<8x128xf32>
    %1 = arith.truncf %0 : vector<8x128xf32> to vector<8x128xbf16>
    %c0_1 = arith.constant 0 : index
    %c0_2 = arith.constant 0 : index
    %2 = vector.load %arg2[%c0_1, %c0_2] : memref<128x256xbf16, #tpu.memory_space<vmem>>, vector<128x256xbf16>
    %cst = arith.constant dense<0.000000e+00> : vector<8x256xf32>
    %3 = tpu.matmul %1, %2, %cst {dimension_numbers = #tpu.dot_dimension_numbers<[1], [0], [0], [1], [0, 0, 1, 1], [], []>} : vector<8x128xbf16>, vector<128x256xbf16>, vector<8x256xf32> -> vector<8x256xf32>
    %c0_3 = arith.constant 0 : index
    %c0_4 = arith.constant 0 : index
    %4 = vector.load %arg3[%c0_3, %c0_4] : memref<1x256xf32, #tpu.memory_space<vmem>>, vector<1x256xf32>
    %5 = vector.broadcast %4 : vector<1x256xf32> to vector<8x256xf32>
    %6 = arith.addf %3, %5 : vector<8x256xf32>
    %7 = arith.negf %6 : vector<8x256xf32>
    %8 = math.exp %7 : vector<8x256xf32>
    %cst_5 = arith.constant 1.000000e+00 : f32
    %9 = vector.broadcast %cst_5 : f32 to vector<8x256xf32>
    %10 = arith.addf %9, %8 : vector<8x256xf32>
    %11 = arith.divf %9, %10 : vector<8x256xf32>
    %12 = arith.mulf %6, %11 : vector<8x256xf32>
    %13 = arith.truncf %12 : vector<8x256xf32> to vector<8x256xbf16>
    %c0_6 = arith.constant 0 : index
    %c0_7 = arith.constant 0 : index
    %14 = vector.load %arg4[%c0_6, %c0_7] : memref<256x256xbf16, #tpu.memory_space<vmem>>, vector<256x256xbf16>
    %cst_8 = arith.constant dense<0.000000e+00> : vector<8x256xf32>
    %15 = tpu.matmul %13, %14, %cst_8 {dimension_numbers = #tpu.dot_dimension_numbers<[1], [0], [0], [1], [0, 0, 1, 1], [], []>} : vector<8x256xbf16>, vector<256x256xbf16>, vector<8x256xf32> -> vector<8x256xf32>
    %c0_9 = arith.constant 0 : index
    %c0_10 = arith.constant 0 : index
    %16 = vector.load %arg5[%c0_9, %c0_10] : memref<1x256xf32, #tpu.memory_space<vmem>>, vector<1x256xf32>
    %17 = vector.broadcast %16 : vector<1x256xf32> to vector<8x256xf32>
    %18 = arith.addf %15, %17 : vector<8x256xf32>
    %c0_11 = arith.constant 0 : index
    %c0_12 = arith.constant 0 : index
    %19 = vector.load %arg6[%c0_11, %c0_12] : memref<8x256xf32, #tpu.memory_space<vmem>>, vector<8x256xf32>
    tpu.vector_store %arg6[%c0_11, %c0_12], %18 {strides = array<i32>} : memref<8x256xf32, #tpu.memory_space<vmem>>, vector<8x256xf32>,
    return
  }
  func.func @transform_0(%arg0: i32) -> (i32, i32) {
    %c0_i32 = arith.constant 0 : i32
    %c0_i32_0 = arith.constant 0 : i32
    %c0_i32_1 = arith.constant 0 : i32
    return %c0_i32, %c0_i32_0 : i32, i32
  }
  func.func @transform_1(%arg0: i32) -> (i32, i32) {
    %c0_i32 = arith.constant 0 : i32
    %c0_i32_0 = arith.constant 0 : i32
    %c0_i32_1 = arith.constant 0 : i32
    return %c0_i32, %c0_i32_0 : i32, i32
  }
  func.func @transform_2(%arg0: i32) -> (i32, i32) {
    %c0_i32 = arith.constant 0 : i32
    %c0_i32_0 = arith.constant 0 : i32
    %c0_i32_1 = arith.constant 0 : i32
    return %c0_i32, %c0_i32_0 : i32, i32
  }
  func.func @transform_3(%arg0: i32) -> (i32, i32) {
    %c0_i32 = arith.constant 0 : i32
    %c0_i32_0 = arith.constant 0 : i32
    return %c0_i32, %arg0 : i32, i32
  }
  func.func @transform_4(%arg0: i32) -> (i32, i32) {
    %c0_i32 = arith.constant 0 : i32
    %c0_i32_0 = arith.constant 0 : i32
    return %c0_i32, %arg0 : i32, i32
  }
  func.func @transform_5(%arg0: i32) -> (i32, i32) {
    %c0_i32 = arith.constant 0 : i32
    %c0_i32_0 = arith.constant 0 : i32
    return %c0_i32, %arg0 : i32, i32
  }
}

</mosaic_0001>

<llo_original>
// kernel: tpu_custom_call.1
$region0: #{tpu_custom_call.1}
  #allocation0 [shape = 'u32[]', space=smem, size = 0x4, offset = 0x4, fixed_abs, tag = 'smem constant byte address 0x4 - core index']
  #allocation1 [shape = 'u32[72,128]{1,0:T(1,128)}', space=vmem, size = 0x9000, scoped, tag = 'internal scratch']
  %s0 = inlined_call_operand.hbm [shape: f32[8,128], index: 0, kind: input, shape index: {}]
  %s1 = inlined_call_operand.hbm [shape: bf16[128,256], index: 1, kind: input, shape index: {}]
  %s2 = inlined_call_operand.hbm [shape: f32[1,256], index: 2, kind: input, shape index: {}]
  %s3 = inlined_call_operand.hbm [shape: bf16[256,256], index: 3, kind: input, shape index: {}]
  %s4 = inlined_call_operand.vmem [shape: f32[1,256], index: 4, kind: input, shape index: {}]
  %s5 = inlined_call_operand.hbm [shape: f32[8,256], index: 5, kind: output, shape index: {}]
  %s6 = sld [smem:[#allocation0]]
  $region46: #{tpu_custom_call.1} parent=0
    _
  %s8 = ssub.s32 1, %s6
  %s9 = scalar_select 0, %s8, %s6
  $region1: #{tpu_custom_call.1} parent=0
    #allocation2 [shape = 'u8[4096]{0}', space=vmem, size = 0x1000, scoped, tag = 'input window, operand 0, single buffered']
    #allocation3 [shape = 's32[1]{0}', space=sflag, size = 0x4, scoped, tag = 'scoped memory for tpu_custom_call.1']
    #allocation4 [shape = 's32[1]{0}', space=sflag, size = 0x4, scoped, tag = 'scoped memory for tpu_custom_call.1']
    #allocation5 [shape = 'u8[65536]{0}', space=vmem, size = 0x10000, scoped, tag = 'input window, operand 1, single buffered']
    #allocation6 [shape = 's32[1]{0}', space=sflag, size = 0x4, scoped, tag = 'scoped memory for tpu_custom_call.1']
    #allocation7 [shape = 'u8[1024]{0}', space=vmem, size = 0x400, scoped, tag = 'input window, operand 2, single buffered']
    #allocation8 [shape = 'u8[131072]{0}', space=vmem, size = 0x20000, scoped, tag = 'input window, operand 3, single buffered']
    #allocation9 [shape = 's32[1]{0}', space=sflag, size = 0x4, scoped, tag = 'scoped memory for tpu_custom_call.1']
    #allocation10 [shape = 'u8[8192]{0}', space=vmem, size = 0x2000, scoped, tag = 'output window, operand 0, single buffered']
    %10 = vsyncpa [#allocation3], 0
    %11 = vsyncpa [#allocation6], 0
    %12 = vsyncpa [#allocation9], 0
    %13 = vsyncpa [#allocation4], 0
    // Predicated region
    $region2: #{tpu_custom_call.1} parent=1 // pred_check
      _
    $region3: #{tpu_custom_call.1} parent=1 // pred_check_branch
      %15 = sbr.rel (0) target = $region5
    $region4: #{tpu_custom_call.1} parent=1 // pred_region
      %17 = vsyncadd [#allocation3], 0
      %s19 = sshll.u32 %s0, 4
      %s20 = int_to_ptr.hbm [resolvable:$true] %s19
      %s21 = sshll.u32 [#allocation2], 4
      %s22 = int_to_ptr.vmem [resolvable:$true] %s21
      %24 = dma.hbm_to_vmem [thread:$0]  %s20, 128, %s22, [#allocation3]
    $region5: #{tpu_custom_call.1} parent=1 // pred_fallthru
      _
    // Predicated region
    $region6: #{tpu_custom_call.1} parent=1 // pred_check
      _
    $region7: #{tpu_custom_call.1} parent=1 // pred_check_branch
      %26 = sbr.rel (0) target = $region9
    $region8: #{tpu_custom_call.1} parent=1 // pred_region
      %28 = vsyncadd [#allocation6], 0
      %s29 = sshll.u32 %s1, 4
      %s30 = int_to_ptr.hbm [resolvable:$true] %s29
      %s31 = sshll.u32 [#allocation5], 4
      %s32 = int_to_ptr.vmem [resolvable:$true] %s31
      %37 = dma.hbm_to_vmem [thread:$0]  %s30, 2048, %s32, [#allocation6], 128, 128, 8
    $region9: #{tpu_custom_call.1} parent=1 // pred_fallthru
      _
    // Predicated region
    $region10: #{tpu_custom_call.1} parent=1 // pred_check
      _
    $region11: #{tpu_custom_call.1} parent=1 // pred_check_branch
      %39 = sbr.rel (0) target = $region13
    $region12: #{tpu_custom_call.1} parent=1 // pred_region
      %41 = vsyncadd [#allocation6], 0
      %s43 = sshll.u32 %s2, 4
      %s44 = int_to_ptr.hbm [resolvable:$true] %s43
      %s45 = sshll.u32 [#allocation7], 4
      %s46 = int_to_ptr.vmem [resolvable:$true] %s45
      %48 = dma.hbm_to_vmem [thread:$0]  %s44, 32, %s46, [#allocation6]
    $region13: #{tpu_custom_call.1} parent=1 // pred_fallthru
      _
    // Predicated region
    $region14: #{tpu_custom_call.1} parent=1 // pred_check
      _
    $region15: #{tpu_custom_call.1} parent=1 // pred_check_branch
      %50 = sbr.rel (0) target = $region17
    $region16: #{tpu_custom_call.1} parent=1 // pred_region
      %52 = vsyncadd [#allocation9], 0
      %s53 = sshll.u32 %s3, 4
      %s54 = int_to_ptr.hbm [resolvable:$true] %s53
      %s55 = sshll.u32 [#allocation8], 4
      %s56 = int_to_ptr.vmem [resolvable:$true] %s55
      %61 = dma.hbm_to_vmem [thread:$0]  %s54, 4096, %s56, [#allocation9], 128, 128, 8
    $region17: #{tpu_custom_call.1} parent=1 // pred_fallthru
      _
    // Predicated region
    $region18: #{tpu_custom_call.1} parent=1 // pred_check
      _
    $region19: #{tpu_custom_call.1} parent=1 // pred_check_branch
      %63 = sbr.rel (0) target = $region21
    $region20: #{tpu_custom_call.1} parent=1 // pred_region
      _
    $region21: #{tpu_custom_call.1} parent=1 // pred_fallthru
      _
    // Predicated region
    $region22: #{tpu_custom_call.1} parent=1 // pred_check
      _
    $region23: #{tpu_custom_call.1} parent=1 // pred_check_branch
      %65 = sbr.rel (0) target = $region25
    $region24: #{tpu_custom_call.1} parent=1 // pred_region
      %67 = dma.done [#allocation3], 128
    $region25: #{tpu_custom_call.1} parent=1 // pred_fallthru
      _
    // Predicated region
    $region26: #{tpu_custom_call.1} parent=1 // pred_check
      _
    $region27: #{tpu_custom_call.1} parent=1 // pred_check_branch
      %69 = sbr.rel (0) target = $region29
    $region28: #{tpu_custom_call.1} parent=1 // pred_region
      %71 = dma.done [#allocation6], 2048
    $region29: #{tpu_custom_call.1} parent=1 // pred_fallthru
      _
    // Predicated region
    $region30: #{tpu_custom_call.1} parent=1 // pred_check
      _
    $region31: #{tpu_custom_call.1} parent=1 // pred_check_branch
      %73 = sbr.rel (0) target = $region33
    $region32: #{tpu_custom_call.1} parent=1 // pred_region
      %75 = dma.done [#allocation6], 32
    $region33: #{tpu_custom_call.1} parent=1 // pred_fallthru
      _
    // Predicated region
    $region34: #{tpu_custom_call.1} parent=1 // pred_check
      _
    $region35: #{tpu_custom_call.1} parent=1 // pred_check_branch
      %77 = sbr.rel (0) target = $region37
    $region36: #{tpu_custom_call.1} parent=1 // pred_region
      %79 = dma.done [#allocation9], 4096
    $region37: #{tpu_custom_call.1} parent=1 // pred_fallthru
      _
    %v80 = vld [vmem:[#allocation2] sm:$0xff]
    %v81 = vpack.c.bf16 %v80, %v80
    %v82 = vld [vmem:[#allocation5] sm:$0xff]
    %v83 = vld [vmem:[#allocation5 + $0x8] sm:$0xff]
    %v84 = vld [vmem:[#allocation5 + $0x10] sm:$0xff]
    %v85 = vld [vmem:[#allocation5 + $0x18] sm:$0xff]
    %v86 = vld [vmem:[#allocation5 + $0x20] sm:$0xff]
    %v87 = vld [vmem:[#allocation5 + $0x28] sm:$0xff]
    %v88 = vld [vmem:[#allocation5 + $0x30] sm:$0xff]
    %v89 = vld [vmem:[#allocation5 + $0x38] sm:$0xff]
    %v90 = vld [vmem:[#allocation5 + $0x40] sm:$0xff]
    %v91 = vld [vmem:[#allocation5 + $0x48] sm:$0xff]
    %v92 = vld [vmem:[#allocation5 + $0x50] sm:$0xff]
    %v93 = vld [vmem:[#allocation5 + $0x58] sm:$0xff]
    %v94 = vld [vmem:[#allocation5 + $0x60] sm:$0xff]
    %v95 = vld [vmem:[#allocation5 + $0x68] sm:$0xff]
    %v96 = vld [vmem:[#allocation5 + $0x70] sm:$0xff]
    %v97 = vld [vmem:[#allocation5 + $0x78] sm:$0xff]
    %v98 = vld [vmem:[#allocation7] sm:$0x3]
    %v100 = vperm.slane %v98, 0
    %v101 = vperm.slane %v98, 1
    %v120 = vunpack.c.l.b16 %v82
    %v121 = vunpack.c.h.b16 %v82
    %v122 = vunpack.c.l.b16 %v83
    %v123 = vunpack.c.h.b16 %v83
    %v124 = vunpack.c.l.b16 %v84
    %v125 = vunpack.c.h.b16 %v84
    %v126 = vunpack.c.l.b16 %v85
    %v127 = vunpack.c.h.b16 %v85
    %v128 = vunpack.c.l.b16 %v86
    %v129 = vunpack.c.h.b16 %v86
    %v130 = vunpack.c.l.b16 %v87
    %v131 = vunpack.c.h.b16 %v87
    %v132 = vunpack.c.l.b16 %v88
    %v133 = vunpack.c.h.b16 %v88
    %v134 = vunpack.c.l.b16 %v89
    %v135 = vunpack.c.h.b16 %v89
    %v136 = vunpack.c.l.b16 %v90
    %v137 = vunpack.c.h.b16 %v90
    %v138 = vunpack.c.l.b16 %v91
    %v139 = vunpack.c.h.b16 %v91
    %v140 = vunpack.c.l.b16 %v92
    %v141 = vunpack.c.h.b16 %v92
    %v142 = vunpack.c.l.b16 %v93
    %v143 = vunpack.c.h.b16 %v93
    %v144 = vunpack.c.l.b16 %v94
    %v145 = vunpack.c.h.b16 %v94
    %v146 = vunpack.c.l.b16 %v95
    %v147 = vunpack.c.h.b16 %v95
    %v148 = vunpack.c.l.b16 %v96
    %v149 = vunpack.c.h.b16 %v96
    %v150 = vunpack.c.l.b16 %v97
    %v151 = vunpack.c.h.b16 %v97
    %v152 = vpack.c.b16 %v122, %v120
    %v153 = vpack.c.b16 %v123, %v121
    %v154 = vpack.c.b16 %v126, %v124
    %v155 = vpack.c.b16 %v127, %v125
    %v156 = vpack.c.b16 %v130, %v128
    %v157 = vpack.c.b16 %v131, %v129
    %v158 = vpack.c.b16 %v134, %v132
    %v159 = vpack.c.b16 %v135, %v133
    %v160 = vpack.c.b16 %v138, %v136
    %v161 = vpack.c.b16 %v139, %v137
    %v162 = vpack.c.b16 %v142, %v140
    %v163 = vpack.c.b16 %v143, %v141
    %v164 = vpack.c.b16 %v146, %v144
    %v165 = vpack.c.b16 %v147, %v145
    %v166 = vpack.c.b16 %v150, %v148
    %v167 = vpack.c.b16 %v151, %v149
    %184 = vmatpush.bf16.msra.mxu0 %v166
    %185 = vmatpush.bf16.msra.mxu0 %v164
    %186 = vmatpush.bf16.msra.mxu0 %v162
    %187 = vmatpush.bf16.msra.mxu0 %v160
    %188 = vmatpush.bf16.msra.mxu0 %v158
    %189 = vmatpush.bf16.msra.mxu0 %v156
    %190 = vmatpush.bf16.msra.mxu0 %v154
    %191 = vmatpush.bf16.msra.mxu0 %v152
    %192 = vmatmul.bf16.gmra.mxu0 %v81
    %v193 = vpop.f32.mrf.mxu0
    %v194 = vadd.f32 %v100, %v193
    %v195 = vpop.f32.mrf.mxu0
    %196 = vdwg.mxu0
    %197 = vmatpush.bf16.msra.mxu0 %v167
    %198 = vmatpush.bf16.msra.mxu0 %v165
    %199 = vmatpush.bf16.msra.mxu0 %v163
    %200 = vmatpush.bf16.msra.mxu0 %v161
    %201 = vmatpush.bf16.msra.mxu0 %v159
    %202 = vmatpush.bf16.msra.mxu0 %v157
    %203 = vmatpush.bf16.msra.mxu0 %v155
    %204 = vmatpush.bf16.msra.mxu0 %v153
    %205 = vmatmul.bf16.gmra.mxu0 %v81
    %v206 = vpop.f32.mrf.mxu0
    %v207 = vadd.f32 %v101, %v206
    %v208 = vpop.f32.mrf.mxu0
    %209 = vdwg.mxu0
    %v210 = vxor.u32 %v194, 2147483648
    %v211 = vxor.u32 %v207, 2147483648
    %v212 = vmul.f32 %v210, 1.442695
    %v213 = vpow.pop %v212
    %v214 = vmul.f32 %v211, 1.442695
    %v215 = vpow.pop %v214
    %v216 = vadd.f32 %v213, 1.0
    %v217 = vadd.f32 %v215, 1.0
    %v218 = vrcp.pop %v216
    %v219 = vmul.f32 %v216, %v218
    %v220 = vsub.f32 1.0, %v219
    %v221 = vmul.f32 %v218, %v220
    %v222 = vadd.f32 %v218, %v221
    %vm223 = vweird.f32 %v216
    %vm224 = vweird.f32 %v218
    %vm225 = vmor %vm223, %vm224
    %v226 = vsel %vm225, %v218, %v222
    %v227 = vand.u32 2147483647, %v216
    %vm228 = vcmp.eq.f32.partialorder %v227, 8.507059e+37
    %v229 = vand.u32 %v216, 2147483648
    %v230 = vor.u32 1.1754944e-38, %v229
    %v231 = vsel %vm228, %v230, %v226
    %v232 = vmul.f32 1.0, %v231
    %v233 = vrcp.pop %v217
    %v234 = vmul.f32 %v217, %v233
    %v235 = vsub.f32 1.0, %v234
    %v236 = vmul.f32 %v233, %v235
    %v237 = vadd.f32 %v233, %v236
    %vm238 = vweird.f32 %v217
    %vm239 = vweird.f32 %v233
    %vm240 = vmor %vm238, %vm239
    %v241 = vsel %vm240, %v233, %v237
    %v242 = vand.u32 2147483647, %v217
    %vm243 = vcmp.eq.f32.partialorder %v242, 8.507059e+37
    %v244 = vand.u32 %v217, 2147483648
    %v245 = vor.u32 1.1754944e-38, %v244
    %v246 = vsel %vm243, %v245, %v241
    %v247 = vmul.f32 1.0, %v246
    %v248 = vmul.f32 %v194, %v232
    %v249 = vmul.f32 %v207, %v247
    %v250 = vpack.c.bf16 %v248, %v248
    %v251 = vpack.c.bf16 %v249, %v249
    %v252 = vld [vmem:[#allocation8] sm:$0xff]
    %v253 = vld [vmem:[#allocation8 + $0x8] sm:$0xff]
    %v254 = vld [vmem:[#allocation8 + $0x10] sm:$0xff]
    %v255 = vld [vmem:[#allocation8 + $0x18] sm:$0xff]
    %v256 = vld [vmem:[#allocation8 + $0x20] sm:$0xff]
    %v257 = vld [vmem:[#allocation8 + $0x28] sm:$0xff]
    %v258 = vld [vmem:[#allocation8 + $0x30] sm:$0xff]
    %v259 = vld [vmem:[#allocation8 + $0x38] sm:$0xff]
    %v260 = vld [vmem:[#allocation8 + $0x40] sm:$0xff]
    %v261 = vld [vmem:[#allocation8 + $0x48] sm:$0xff]
    %v262 = vld [vmem:[#allocation8 + $0x50] sm:$0xff]
    %v263 = vld [vmem:[#allocation8 + $0x58] sm:$0xff]
    %v264 = vld [vmem:[#allocation8 + $0x60] sm:$0xff]
    %v265 = vld [vmem:[#allocation8 + $0x68] sm:$0xff]
    %v266 = vld [vmem:[#allocation8 + $0x70] sm:$0xff]
    %v267 = vld [vmem:[#allocation8 + $0x78] sm:$0xff]
    %v268 = vld [vmem:[#allocation8 + $0x80] sm:$0xff]
    %v269 = vld [vmem:[#allocation8 + $0x88] sm:$0xff]
    %v270 = vld [vmem:[#allocation8 + $0x90] sm:$0xff]
    %v271 = vld [vmem:[#allocation8 + $0x98] sm:$0xff]
    %v272 = vld [vmem:[#allocation8 + $0xa0] sm:$0xff]
    %v273 = vld [vmem:[#allocation8 + $0xa8] sm:$0xff]
    %v274 = vld [vmem:[#allocation8 + $0xb0] sm:$0xff]
    %v275 = vld [vmem:[#allocation8 + $0xb8] sm:$0xff]
    %v276 = vld [vmem:[#allocation8 + $0xc0] sm:$0xff]
    %v277 = vld [vmem:[#allocation8 + $0xc8] sm:$0xff]
    %v278 = vld [vmem:[#allocation8 + $0xd0] sm:$0xff]
    %v279 = vld [vmem:[#allocation8 + $0xd8] sm:$0xff]
    %v280 = vld [vmem:[#allocation8 + $0xe0] sm:$0xff]
    %v281 = vld [vmem:[#allocation8 + $0xe8] sm:$0xff]
    %v282 = vld [vmem:[#allocation8 + $0xf0] sm:$0xff]
    %v283 = vld [vmem:[#allocation8 + $0xf8] sm:$0xff]
    %v284 = vld [vmem:[%s4] sm:$0x3]
    %v286 = vperm.slane %v284, 0
    %v287 = vperm.slane %v284, 1
    %v322 = vunpack.c.l.b16 %v252
    %v323 = vunpack.c.h.b16 %v252
    %v324 = vunpack.c.l.b16 %v253
    %v325 = vunpack.c.h.b16 %v253
    %v326 = vunpack.c.l.b16 %v254
    %v327 = vunpack.c.h.b16 %v254
    %v328 = vunpack.c.l.b16 %v255
    %v329 = vunpack.c.h.b16 %v255
    %v330 = vunpack.c.l.b16 %v256
    %v331 = vunpack.c.h.b16 %v256
    %v332 = vunpack.c.l.b16 %v257
    %v333 = vunpack.c.h.b16 %v257
    %v334 = vunpack.c.l.b16 %v258
    %v335 = vunpack.c.h.b16 %v258
    %v336 = vunpack.c.l.b16 %v259
    %v337 = vunpack.c.h.b16 %v259
    %v338 = vunpack.c.l.b16 %v260
    %v339 = vunpack.c.h.b16 %v260
    %v340 = vunpack.c.l.b16 %v261
    %v341 = vunpack.c.h.b16 %v261
    %v342 = vunpack.c.l.b16 %v262
    %v343 = vunpack.c.h.b16 %v262
    %v344 = vunpack.c.l.b16 %v263
    %v345 = vunpack.c.h.b16 %v263
    %v346 = vunpack.c.l.b16 %v264
    %v347 = vunpack.c.h.b16 %v264
    %v348 = vunpack.c.l.b16 %v265
    %v349 = vunpack.c.h.b16 %v265
    %v350 = vunpack.c.l.b16 %v266
    %v351 = vunpack.c.h.b16 %v266
    %v352 = vunpack.c.l.b16 %v267
    %v353 = vunpack.c.h.b16 %v267
    %v354 = vunpack.c.l.b16 %v268
    %v355 = vunpack.c.h.b16 %v268
    %v356 = vunpack.c.l.b16 %v269
    %v357 = vunpack.c.h.b16 %v269
    %v358 = vunpack.c.l.b16 %v270
    %v359 = vunpack.c.h.b16 %v270
    %v360 = vunpack.c.l.b16 %v271
    %v361 = vunpack.c.h.b16 %v271
    %v362 = vunpack.c.l.b16 %v272
    %v363 = vunpack.c.h.b16 %v272
    %v364 = vunpack.c.l.b16 %v273
    %v365 = vunpack.c.h.b16 %v273
    %v366 = vunpack.c.l.b16 %v274
    %v367 = vunpack.c.h.b16 %v274
    %v368 = vunpack.c.l.b16 %v275
    %v369 = vunpack.c.h.b16 %v275
    %v370 = vunpack.c.l.b16 %v276
    %v371 = vunpack.c.h.b16 %v276
    %v372 = vunpack.c.l.b16 %v277
    %v373 = vunpack.c.h.b16 %v277
    %v374 = vunpack.c.l.b16 %v278
    %v375 = vunpack.c.h.b16 %v278
    %v376 = vunpack.c.l.b16 %v279
    %v377 = vunpack.c.h.b16 %v279
    %v378 = vunpack.c.l.b16 %v280
    %v379 = vunpack.c.h.b16 %v280
    %v380 = vunpack.c.l.b16 %v281
    %v381 = vunpack.c.h.b16 %v281
    %v382 = vunpack.c.l.b16 %v282
    %v383 = vunpack.c.h.b16 %v282
    %v384 = vunpack.c.l.b16 %v283
    %v385 = vunpack.c.h.b16 %v283
    %v386 = vpack.c.b16 %v324, %v322
    %v387 = vpack.c.b16 %v325, %v323
    %v388 = vpack.c.b16 %v328, %v326
    %v389 = vpack.c.b16 %v329, %v327
    %v390 = vpack.c.b16 %v332, %v330
    %v391 = vpack.c.b16 %v333, %v331
    %v392 = vpack.c.b16 %v336, %v334
    %v393 = vpack.c.b16 %v337, %v335
    %v394 = vpack.c.b16 %v340, %v338
    %v395 = vpack.c.b16 %v341, %v339
    %v396 = vpack.c.b16 %v344, %v342
    %v397 = vpack.c.b16 %v345, %v343
    %v398 = vpack.c.b16 %v348, %v346
    %v399 = vpack.c.b16 %v349, %v347
    %v400 = vpack.c.b16 %v352, %v350
    %v401 = vpack.c.b16 %v353, %v351
    %v402 = vpack.c.b16 %v356, %v354
    %v403 = vpack.c.b16 %v357, %v355
    %v404 = vpack.c.b16 %v360, %v358
    %v405 = vpack.c.b16 %v361, %v359
    %v406 = vpack.c.b16 %v364, %v362
    %v407 = vpack.c.b16 %v365, %v363
    %v408 = vpack.c.b16 %v368, %v366
    %v409 = vpack.c.b16 %v369, %v367
    %v410 = vpack.c.b16 %v372, %v370
    %v411 = vpack.c.b16 %v373, %v371
    %v412 = vpack.c.b16 %v376, %v374
    %v413 = vpack.c.b16 %v377, %v375
    %v414 = vpack.c.b16 %v380, %v378
    %v415 = vpack.c.b16 %v381, %v379
    %v416 = vpack.c.b16 %v384, %v382
    %v417 = vpack.c.b16 %v385, %v383
    %450 = vmatpush.bf16.msra.mxu0 %v400
    %451 = vmatpush.bf16.msra.mxu0 %v398
    %452 = vmatpush.bf16.msra.mxu0 %v396
    %453 = vmatpush.bf16.msra.mxu0 %v394
    %454 = vmatpush.bf16.msra.mxu0 %v392
    %455 = vmatpush.bf16.msra.mxu0 %v390
    %456 = vmatpush.bf16.msra.mxu0 %v388
    %457 = vmatpush.bf16.msra.mxu0 %v386
    %458 = vmatmul.bf16.gmra.mxu0 %v250
    %v459 = vpop.f32.mrf.mxu0
    %v460 = vadd.f32 %v286, %v459
    %v461 = vpop.f32.mrf.mxu0
    %462 = vdwg.mxu0
    %463 = vmatpush.bf16.msra.mxu0 %v416
    %464 = vmatpush.bf16.msra.mxu0 %v414
    %465 = vmatpush.bf16.msra.mxu0 %v412
    %466 = vmatpush.bf16.msra.mxu0 %v410
    %467 = vmatpush.bf16.msra.mxu0 %v408
    %468 = vmatpush.bf16.msra.mxu0 %v406
    %469 = vmatpush.bf16.msra.mxu0 %v404
    %470 = vmatpush.bf16.msra.mxu0 %v402
    %471 = vmatmul.bf16.gmra.mxu0 %v251
    %v472 = vpop.f32.mrf.mxu0
    %v473 = vadd.f32 %v460, %v472
    %v474 = vpop.f32.mrf.mxu0
    %475 = vdwg.mxu0
    %476 = vmatpush.bf16.msra.mxu0 %v401
    %477 = vmatpush.bf16.msra.mxu0 %v399
    %478 = vmatpush.bf16.msra.mxu0 %v397
    %479 = vmatpush.bf16.msra.mxu0 %v395
    %480 = vmatpush.bf16.msra.mxu0 %v393
    %481 = vmatpush.bf16.msra.mxu0 %v391
    %482 = vmatpush.bf16.msra.mxu0 %v389
    %483 = vmatpush.bf16.msra.mxu0 %v387
    %484 = vmatmul.bf16.gmra.mxu0 %v250
    %v485 = vpop.f32.mrf.mxu0
    %v486 = vadd.f32 %v287, %v485
    %v487 = vpop.f32.mrf.mxu0
    %488 = vdwg.mxu0
    %489 = vmatpush.bf16.msra.mxu0 %v417
    %490 = vmatpush.bf16.msra.mxu0 %v415
    %491 = vmatpush.bf16.msra.mxu0 %v413
    %492 = vmatpush.bf16.msra.mxu0 %v411
    %493 = vmatpush.bf16.msra.mxu0 %v409
    %494 = vmatpush.bf16.msra.mxu0 %v407
    %495 = vmatpush.bf16.msra.mxu0 %v405
    %496 = vmatpush.bf16.msra.mxu0 %v403
    %497 = vmatmul.bf16.gmra.mxu0 %v251
    %v498 = vpop.f32.mrf.mxu0
    %v499 = vadd.f32 %v486, %v498
    %v500 = vpop.f32.mrf.mxu0
    %501 = vdwg.mxu0
    %502 = vst [vmem:[#allocation10] sm:$0xff] %v473
    %503 = vst [vmem:[#allocation10 + $0x8] sm:$0xff] %v499
    // Predicated region
    $region38: #{tpu_custom_call.1} parent=1 // pred_check
      _
    $region39: #{tpu_custom_call.1} parent=1 // pred_check_branch
      %505 = sbr.rel (0) target = $region41
    $region40: #{tpu_custom_call.1} parent=1 // pred_region
      %507 = vsyncadd [#allocation4], 0
      %s509 = sshll.u32 [#allocation10], 4
      %s510 = int_to_ptr.vmem [resolvable:$true] %s509
      %s511 = sshll.u32 %s5, 4
      %s512 = int_to_ptr.hbm [resolvable:$true] %s511
      %514 = dma.vmem_to_hbm [thread:$0]  %s510, 256, %s512, [#allocation4]
    $region41: #{tpu_custom_call.1} parent=1 // pred_fallthru
      _
    // Predicated region
    $region42: #{tpu_custom_call.1} parent=1 // pred_check
      _
    $region43: #{tpu_custom_call.1} parent=1 // pred_check_branch
      %516 = sbr.rel (0) target = $region45
    $region44: #{tpu_custom_call.1} parent=1 // pred_region
      %518 = dma.done [#allocation4], 256
    $region45: #{tpu_custom_call.1} parent=1 // pred_fallthru
      _
    %519 = vsyncpa [#allocation3], 1
    %520 = vsyncpa [#allocation6], 1
    %521 = vsyncpa [#allocation9], 1
    %522 = vsyncpa [#allocation4], 1

</llo_original>
